<compile_context>
chip_gen: v7x
topology: tpu7x:2x2x1
jax: 0.10.0
libtpu: 0.0.40
codegen_flags: <defaults>
</compile_context>

<pallas_src>
import functools

import jax
import jax.numpy as jnp
from jax.experimental import pallas as pl
from jax.experimental.pallas import tpu as pltpu

STATE_DIM = 3     # Pendulum observation dim
ACTION_DIM = 1    # Pendulum action dim
H1, H2, H3 = 256, 256, 128
HEAD = 2 * ACTION_DIM  # fused [mean | std] head width


def _round_up(x, m):
    return ((x + m - 1) // m) * m


def policy_kernel(x_ref,
                  w1_ref, b1_ref,
                  w2_ref, b2_ref,
                  w3_ref, b3_ref,
                  wh_ref, bh_ref,
                  out_ref):
    # ---- layer 1: K=3 contraction done on the VPU (broadcast-FMA), f32 ----
    x = x_ref[...]                 # (TB, 3)  f32
    w1 = w1_ref[...]               # (3, 256) f32
    h1 = (x[:, 0:1] * w1[0:1, :]
          + x[:, 1:2] * w1[1:2, :]
          + x[:, 2:3] * w1[2:3, :]
          + b1_ref[...])
    h1 = jnp.maximum(h1, 0.0)

    # ---- layer 2 / 3: bf16 operands on the MXU, f32 accumulation ----
    h2 = jnp.dot(h1.astype(jnp.bfloat16), w2_ref[...],
                 preferred_element_type=jnp.float32) + b2_ref[...]
    h2 = jnp.maximum(h2, 0.0)

    h3 = jnp.dot(h2.astype(jnp.bfloat16), w3_ref[...],
                 preferred_element_type=jnp.float32) + b3_ref[...]
    h3 = jnp.maximum(h3, 0.0)

    # ---- fused mean/std head: one matmul producing (TB, 2) ----
    head = jnp.dot(h3.astype(jnp.bfloat16), wh_ref[...],
                   preferred_element_type=jnp.float32) + bh_ref[...]

    # column 0 -> mean = tanh(.) * 2 ; column 1 -> std = softplus(.)
    col = jax.lax.broadcasted_iota(jnp.int32, head.shape, 1)
    out_ref[...] = jnp.where(col == 0,
                             jnp.tanh(head) * 2.0,
                             jnp.logaddexp(head, 0.0))


def policy_forward(x, params, tile_b=1024):
    """x: (batch, STATE_DIM) f32. Returns (mean, std), each (batch, ACTION_DIM) f32.

    tile_b: batch-tile size. 1024 is safe on all generations (v7x has only
    64 MiB VMEM / 32 MiB default scoped limit); on v6e/v5e 2048-4096 also works.
    """
    (w1, b1, w2, b2, w3, b3, wm, bm, ws, bs) = params
    batch = x.shape[0]

    # bf16 copies of the MXU operands; fuse the two 1-wide heads into one.
    w2b = w2.astype(jnp.bfloat16)
    w3b = w3.astype(jnp.bfloat16)
    wh = jnp.concatenate([wm, ws], axis=1).astype(jnp.bfloat16)   # (H3, 2)
    bh = jnp.concatenate([bm, bs], axis=1)                        # (1, 2) f32

    # Pad batch to a multiple of the tile (sublane-aligned).
    tile = min(tile_b, _round_up(batch, 8))
    padded = _round_up(batch, tile)
    if padded != batch:
        x = jnp.pad(x, ((0, padded - batch), (0, 0)))
    grid = (padded // tile,)

    resident = lambda i: (0, 0)        # weights/biases: same block every step
    tiled = lambda i: (i, 0)           # x / out: walk the batch axis

    flops = 2 * padded * (STATE_DIM * H1 + H1 * H2 + H2 * H3 + H3 * HEAD)
    bytes_accessed = (
        padded * STATE_DIM * 4 + padded * HEAD * 4          # x + out
        + STATE_DIM * H1 * 4 + H1 * H2 * 2 + H2 * H3 * 2 + H3 * HEAD * 2  # weights
        + (H1 + H2 + H3 + HEAD) * 4)                         # biases

    out = pl.pallas_call(
        policy_kernel,
        out_shape=jax.ShapeDtypeStruct((padded, HEAD), jnp.float32),
        grid=grid,
        in_specs=[
            pl.BlockSpec((tile, STATE_DIM), tiled),     # x
            pl.BlockSpec((STATE_DIM, H1), resident),    # w1 (f32, VPU layer)
            pl.BlockSpec((1, H1), resident),            # b1
            pl.BlockSpec((H1, H2), resident),           # w2 (bf16)
            pl.BlockSpec((1, H2), resident),            # b2
            pl.BlockSpec((H2, H3), resident),           # w3 (bf16)
            pl.BlockSpec((1, H3), resident),            # b3
            pl.BlockSpec((H3, HEAD), resident),         # w_head (bf16)
            pl.BlockSpec((1, HEAD), resident),          # b_head
        ],
        out_specs=pl.BlockSpec((tile, HEAD), tiled),
        compiler_params=pltpu.CompilerParams(
            dimension_semantics=("parallel",)),
        cost_estimate=pl.CostEstimate(
            flops=flops,
            transcendentals=4 * padded,
            bytes_accessed=bytes_accessed),
    )(x, w1, b1, w2b, b2, w3b, b3, wh, bh)

    mean = out[:batch, 0:ACTION_DIM]
    std = out[:batch, ACTION_DIM:HEAD]
    return mean, std


def init_params(key):
    """Deterministic init mimicking PyTorch nn.Linear default:
    uniform(-1/sqrt(fan_in), 1/sqrt(fan_in)) for both weight and bias.
    Weights are stored as [in, out] (transposed vs. torch)."""
    dims = [(STATE_DIM, H1), (H1, H2), (H2, H3), (H3, ACTION_DIM), (H3, ACTION_DIM)]
    params = []
    for (fan_in, fan_out) in dims:
        key, kw, kb = jax.random.split(key, 3)
        bound = 1.0 / jnp.sqrt(jnp.float32(fan_in))
        w = jax.random.uniform(kw, (fan_in, fan_out), jnp.float32, -bound, bound)
        b = jax.random.uniform(kb, (1, fan_out), jnp.float32, -bound, bound)
        params.extend([w, b])
    return tuple(params)


def reference_forward(x, params):
    (w1, b1, w2, b2, w3, b3, wm, bm, ws, bs) = params
    h1 = jax.nn.relu(x @ w1 + b1)
    h2 = jax.nn.relu(h1 @ w2 + b2)
    h3 = jax.nn.relu(h2 @ w3 + b3)
    mean = jnp.tanh(h3 @ wm + bm) * 2.0
    std = jax.nn.softplus(h3 @ ws + bs)
    return mean, std


# TODO(synk): train_net / Adam optimizer / Normal sampling are host-side
# training-loop logic, not part of the forward pass, so not translated.

if __name__ == "__main__":
    key = jax.random.PRNGKey(0)
    key, kx, kx2 = jax.random.split(key, 3)
    params = init_params(key)

    fwd = jax.jit(functools.partial(policy_forward), static_argnames=("tile_b",))

    # Small-shape check (single grid step).
    batch = 8
    x = jax.random.normal(kx, (batch, STATE_DIM), jnp.float32)
    mean, std = fwd(x, params)
    jax.block_until_ready((mean, std))

    ref_mean, ref_std = reference_forward(x, params)
    assert mean.shape == (batch, ACTION_DIM) and std.shape == (batch, ACTION_DIM)
    # bf16 MXU operands (f32 accumulate) => loosened tolerances vs f32 reference.
    assert jnp.allclose(mean, ref_mean, atol=5e-2, rtol=5e-2)
    assert jnp.allclose(std, ref_std, atol=5e-2, rtol=5e-2)
    assert bool(jnp.all(std > 0.0))

    # Exercise the batch grid + padding path (3 grid steps, ragged tail).
    batch2 = 300
    x2 = jax.random.normal(kx2, (batch2, STATE_DIM), jnp.float32)
    mean2, std2 = fwd(x2, params, tile_b=128)
    jax.block_until_ready((mean2, std2))
    ref_mean2, ref_std2 = reference_forward(x2, params)
    assert mean2.shape == (batch2, ACTION_DIM) and std2.shape == (batch2, ACTION_DIM)
    assert jnp.allclose(mean2, ref_mean2, atol=5e-2, rtol=5e-2)
    assert jnp.allclose(std2, ref_std2, atol=5e-2, rtol=5e-2)

    print("KERNEL_OK")
</pallas_src>

<mosaic_0001>
module attributes {stable_mosaic.version = 11 : i64} {
  func.func @policy_kernel(%arg0: i32, %arg1: memref<8x3xf32, #tpu.memory_space<vmem>>, %arg2: memref<3x256xf32, #tpu.memory_space<vmem>>, %arg3: memref<1x256xf32, #tpu.memory_space<vmem>>, %arg4: memref<256x256xbf16, #tpu.memory_space<vmem>>, %arg5: memref<1x256xf32, #tpu.memory_space<vmem>>, %arg6: memref<256x128xbf16, #tpu.memory_space<vmem>>, %arg7: memref<1x128xf32, #tpu.memory_space<vmem>>, %arg8: memref<128x2xbf16, #tpu.memory_space<vmem>>, %arg9: memref<1x2xf32, #tpu.memory_space<vmem>>, %arg10: memref<8x2xf32, #tpu.memory_space<vmem>>) attributes {dimension_semantics = [#tpu.dimension_semantics<parallel>], iteration_bounds = array<i64: 1>, scalar_prefetch = 0 : i64, scratch_operands = 0 : i64, tpu.core_type = #tpu.core_type<tc>, window_params = [{transform_indices = @transform_0, window_bounds = array<i64: 8, 3>}, {pipeline_mode = #tpu.pipeline_mode<synchronous>, transform_indices = @transform_1, window_bounds = array<i64: 3, 256>}, {pipeline_mode = #tpu.pipeline_mode<synchronous>, transform_indices = @transform_2, window_bounds = array<i64: 1, 256>}, {pipeline_mode = #tpu.pipeline_mode<synchronous>, transform_indices = @transform_3, window_bounds = array<i64: 256, 256>}, {pipeline_mode = #tpu.pipeline_mode<synchronous>, transform_indices = @transform_4, window_bounds = array<i64: 1, 256>}, {pipeline_mode = #tpu.pipeline_mode<synchronous>, transform_indices = @transform_5, window_bounds = array<i64: 256, 128>}, {pipeline_mode = #tpu.pipeline_mode<synchronous>, transform_indices = @transform_6, window_bounds = array<i64: 1, 128>}, {pipeline_mode = #tpu.pipeline_mode<synchronous>, transform_indices = @transform_7, window_bounds = array<i64: 128, 2>}, {pipeline_mode = #tpu.pipeline_mode<synchronous>, transform_indices = @transform_8, window_bounds = array<i64: 1, 2>}, {transform_indices = @transform_9, window_bounds = array<i64: 8, 2>}]} {
    %c0 = arith.constant 0 : index
    %c0_0 = arith.constant 0 : index
    %0 = vector.load %arg1[%c0, %c0_0] : memref<8x3xf32, #tpu.memory_space<vmem>>, vector<8x3xf32>
    %c0_1 = arith.constant 0 : index
    %c0_2 = arith.constant 0 : index
    %1 = vector.load %arg2[%c0_1, %c0_2] : memref<3x256xf32, #tpu.memory_space<vmem>>, vector<3x256xf32>
    %2 = vector.extract_strided_slice %0 {offsets = [0, 0], sizes = [8, 1], strides = [1, 1]} : vector<8x3xf32> to vector<8x1xf32>
    %3 = vector.extract_strided_slice %1 {offsets = [0, 0], sizes = [1, 256], strides = [1, 1]} : vector<3x256xf32> to vector<1x256xf32>
    %4 = vector.broadcast %2 : vector<8x1xf32> to vector<8x256xf32>
    %5 = vector.broadcast %3 : vector<1x256xf32> to vector<8x256xf32>
    %6 = arith.mulf %4, %5 : vector<8x256xf32>
    %7 = vector.extract_strided_slice %0 {offsets = [0, 1], sizes = [8, 1], strides = [1, 1]} : vector<8x3xf32> to vector<8x1xf32>
    %8 = vector.extract_strided_slice %1 {offsets = [1, 0], sizes = [1, 256], strides = [1, 1]} : vector<3x256xf32> to vector<1x256xf32>
    %9 = vector.broadcast %7 : vector<8x1xf32> to vector<8x256xf32>
    %10 = vector.broadcast %8 : vector<1x256xf32> to vector<8x256xf32>
    %11 = arith.mulf %9, %10 : vector<8x256xf32>
    %12 = arith.addf %6, %11 : vector<8x256xf32>
    %13 = vector.extract_strided_slice %0 {offsets = [0, 2], sizes = [8, 1], strides = [1, 1]} : vector<8x3xf32> to vector<8x1xf32>
    %14 = vector.extract_strided_slice %1 {offsets = [2, 0], sizes = [1, 256], strides = [1, 1]} : vector<3x256xf32> to vector<1x256xf32>
    %15 = vector.broadcast %13 : vector<8x1xf32> to vector<8x256xf32>
    %16 = vector.broadcast %14 : vector<1x256xf32> to vector<8x256xf32>
    %17 = arith.mulf %15, %16 : vector<8x256xf32>
    %18 = arith.addf %12, %17 : vector<8x256xf32>
    %c0_3 = arith.constant 0 : index
    %c0_4 = arith.constant 0 : index
    %19 = vector.load %arg3[%c0_3, %c0_4] : memref<1x256xf32, #tpu.memory_space<vmem>>, vector<1x256xf32>
    %20 = vector.broadcast %19 : vector<1x256xf32> to vector<8x256xf32>
    %21 = arith.addf %18, %20 : vector<8x256xf32>
    %cst = arith.constant 0.000000e+00 : f32
    %22 = vector.broadcast %cst : f32 to vector<8x256xf32>
    %23 = arith.maximumf %21, %22 : vector<8x256xf32>
    %24 = arith.truncf %23 : vector<8x256xf32> to vector<8x256xbf16>
    %c0_5 = arith.constant 0 : index
    %c0_6 = arith.constant 0 : index
    %25 = vector.load %arg4[%c0_5, %c0_6] : memref<256x256xbf16, #tpu.memory_space<vmem>>, vector<256x256xbf16>
    %cst_7 = arith.constant dense<0.000000e+00> : vector<8x256xf32>
    %26 = tpu.matmul %24, %25, %cst_7 {dimension_numbers = #tpu.dot_dimension_numbers<[1], [0], [0], [1], [0, 0, 1, 1], [], []>} : vector<8x256xbf16>, vector<256x256xbf16>, vector<8x256xf32> -> vector<8x256xf32>
    %c0_8 = arith.constant 0 : index
    %c0_9 = arith.constant 0 : index
    %27 = vector.load %arg5[%c0_8, %c0_9] : memref<1x256xf32, #tpu.memory_space<vmem>>, vector<1x256xf32>
    %28 = vector.broadcast %27 : vector<1x256xf32> to vector<8x256xf32>
    %29 = arith.addf %26, %28 : vector<8x256xf32>
    %cst_10 = arith.constant 0.000000e+00 : f32
    %30 = vector.broadcast %cst_10 : f32 to vector<8x256xf32>
    %31 = arith.maximumf %29, %30 : vector<8x256xf32>
    %32 = arith.truncf %31 : vector<8x256xf32> to vector<8x256xbf16>
    %c0_11 = arith.constant 0 : index
    %c0_12 = arith.constant 0 : index
    %33 = vector.load %arg6[%c0_11, %c0_12] : memref<256x128xbf16, #tpu.memory_space<vmem>>, vector<256x128xbf16>
    %cst_13 = arith.constant dense<0.000000e+00> : vector<8x128xf32>
    %34 = tpu.matmul %32, %33, %cst_13 {dimension_numbers = #tpu.dot_dimension_numbers<[1], [0], [0], [1], [0, 0, 1, 1], [], []>} : vector<8x256xbf16>, vector<256x128xbf16>, vector<8x128xf32> -> vector<8x128xf32>
    %c0_14 = arith.constant 0 : index
    %c0_15 = arith.constant 0 : index
    %35 = vector.load %arg7[%c0_14, %c0_15] : memref<1x128xf32, #tpu.memory_space<vmem>>, vector<1x128xf32>
    %36 = vector.broadcast %35 : vector<1x128xf32> to vector<8x128xf32>
    %37 = arith.addf %34, %36 : vector<8x128xf32>
    %cst_16 = arith.constant 0.000000e+00 : f32
    %38 = vector.broadcast %cst_16 : f32 to vector<8x128xf32>
    %39 = arith.maximumf %37, %38 : vector<8x128xf32>
    %40 = arith.truncf %39 : vector<8x128xf32> to vector<8x128xbf16>
    %c0_17 = arith.constant 0 : index
    %c0_18 = arith.constant 0 : index
    %41 = vector.load %arg8[%c0_17, %c0_18] : memref<128x2xbf16, #tpu.memory_space<vmem>>, vector<128x2xbf16>
    %cst_19 = arith.constant dense<0.000000e+00> : vector<8x2xf32>
    %42 = tpu.matmul %40, %41, %cst_19 {dimension_numbers = #tpu.dot_dimension_numbers<[1], [0], [0], [1], [0, 0, 1, 1], [], []>} : vector<8x128xbf16>, vector<128x2xbf16>, vector<8x2xf32> -> vector<8x2xf32>
    %c0_20 = arith.constant 0 : index
    %c0_21 = arith.constant 0 : index
    %43 = vector.load %arg9[%c0_20, %c0_21] : memref<1x2xf32, #tpu.memory_space<vmem>>, vector<1x2xf32>
    %44 = vector.broadcast %43 : vector<1x2xf32> to vector<8x2xf32>
    %45 = arith.addf %42, %44 : vector<8x2xf32>
    %46 = tpu.iota {dimensions = array<i32: 1>} : vector<8x2xi32>
    %c0_i32 = arith.constant 0 : i32
    %47 = vector.broadcast %c0_i32 : i32 to vector<8x2xi32>
    %48 = arith.cmpi eq, %46, %47 : vector<8x2xi32>
    %49 = math.tanh %45 : vector<8x2xf32>
    %cst_22 = arith.constant 2.000000e+00 : f32
    %50 = vector.broadcast %cst_22 : f32 to vector<8x2xf32>
    %51 = arith.mulf %49, %50 : vector<8x2xf32>
    %cst_23 = arith.constant 0.000000e+00 : f32
    %52 = vector.broadcast %cst_23 : f32 to vector<8x2xf32>
    %53 = arith.maximumf %45, %52 : vector<8x2xf32>
    %54 = vector.broadcast %cst_23 : f32 to vector<8x2xf32>
    %55 = arith.subf %45, %54 : vector<8x2xf32>
    %56 = arith.cmpf one, %55, %55 : vector<8x2xf32>
    %57 = vector.broadcast %cst_23 : f32 to vector<8x2xf32>
    %58 = arith.addf %45, %57 : vector<8x2xf32>
    %59 = math.absf %55 : vector<8x2xf32>
    %cst_24 = arith.constant 0.000000e+00 : f32
    %60 = vector.broadcast %cst_24 : f32 to vector<8x2xf32>
    %61 = arith.subf %60, %59 : vector<8x2xf32>
    %62 = math.exp %61 : vector<8x2xf32>
    %63 = math.log1p %62 : vector<8x2xf32>
    %64 = arith.addf %53, %63 : vector<8x2xf32>
    %65 = arith.select %56, %58, %64 : vector<8x2xi1>, vector<8x2xf32>
    %66 = arith.select %48, %51, %65 : vector<8x2xi1>, vector<8x2xf32>
    %c0_25 = arith.constant 0 : index
    %c0_26 = arith.constant 0 : index
    %67 = vector.load %arg10[%c0_25, %c0_26] : memref<8x2xf32, #tpu.memory_space<vmem>>, vector<8x2xf32>
    tpu.vector_store %arg10[%c0_25, %c0_26], %66 {strides = array<i32>} : memref<8x2xf32, #tpu.memory_space<vmem>>, vector<8x2xf32>,
    return
  }
  func.func @transform_0(%arg0: i32) -> (i32, i32) {
    %c0_i32 = arith.constant 0 : i32
    %c0_i32_0 = arith.constant 0 : i32
    return %arg0, %c0_i32 : i32, i32
  }
  func.func @transform_1(%arg0: i32) -> (i32, i32) {
    %c0_i32 = arith.constant 0 : i32
    %c0_i32_0 = arith.constant 0 : i32
    %c0_i32_1 = arith.constant 0 : i32
    return %c0_i32, %c0_i32_0 : i32, i32
  }
  func.func @transform_2(%arg0: i32) -> (i32, i32) {
    %c0_i32 = arith.constant 0 : i32
    %c0_i32_0 = arith.constant 0 : i32
    %c0_i32_1 = arith.constant 0 : i32
    return %c0_i32, %c0_i32_0 : i32, i32
  }
  func.func @transform_3(%arg0: i32) -> (i32, i32) {
    %c0_i32 = arith.constant 0 : i32
    %c0_i32_0 = arith.constant 0 : i32
    %c0_i32_1 = arith.constant 0 : i32
    return %c0_i32, %c0_i32_0 : i32, i32
  }
  func.func @transform_4(%arg0: i32) -> (i32, i32) {
    %c0_i32 = arith.constant 0 : i32
    %c0_i32_0 = arith.constant 0 : i32
    %c0_i32_1 = arith.constant 0 : i32
    return %c0_i32, %c0_i32_0 : i32, i32
  }
  func.func @transform_5(%arg0: i32) -> (i32, i32) {
    %c0_i32 = arith.constant 0 : i32
    %c0_i32_0 = arith.constant 0 : i32
    %c0_i32_1 = arith.constant 0 : i32
    return %c0_i32, %c0_i32_0 : i32, i32
  }
  func.func @transform_6(%arg0: i32) -> (i32, i32) {
    %c0_i32 = arith.constant 0 : i32
    %c0_i32_0 = arith.constant 0 : i32
    %c0_i32_1 = arith.constant 0 : i32
    return %c0_i32, %c0_i32_0 : i32, i32
  }
  func.func @transform_7(%arg0: i32) -> (i32, i32) {
    %c0_i32 = arith.constant 0 : i32
    %c0_i32_0 = arith.constant 0 : i32
    %c0_i32_1 = arith.constant 0 : i32
    return %c0_i32, %c0_i32_0 : i32, i32
  }
  func.func @transform_8(%arg0: i32) -> (i32, i32) {
    %c0_i32 = arith.constant 0 : i32
    %c0_i32_0 = arith.constant 0 : i32
    %c0_i32_1 = arith.constant 0 : i32
    return %c0_i32, %c0_i32_0 : i32, i32
  }
  func.func @transform_9(%arg0: i32) -> (i32, i32) {
    %c0_i32 = arith.constant 0 : i32
    %c0_i32_0 = arith.constant 0 : i32
    return %arg0, %c0_i32 : i32, i32
  }
}

</mosaic_0001>

<llo_original>
// kernel: policy_forward.1
$region0: #{policy_forward.1}
  #allocation0 [shape = 'u32[]', space=smem, size = 0x4, offset = 0x4, fixed_abs, tag = 'smem constant byte address 0x4 - core index']
  #allocation1 [shape = 'u32[144,128]{1,0:T(1,128)}', space=vmem, size = 0x12000, scoped, tag = 'internal scratch']
  %s0 = inlined_call_operand.vmem [shape: f32[8,3], index: 0, kind: input, shape index: {}]
  %s1 = inlined_call_operand.vmem [shape: f32[3,256], index: 1, kind: input, shape index: {}]
  %s2 = inlined_call_operand.vmem [shape: f32[1,256], index: 2, kind: input, shape index: {}]
  %s3 = inlined_call_operand.vmem [shape: bf16[256,256], index: 3, kind: input, shape index: {}]
  %s4 = inlined_call_operand.vmem [shape: f32[1,256], index: 4, kind: input, shape index: {}]
  %s5 = inlined_call_operand.vmem [shape: bf16[256,128], index: 5, kind: input, shape index: {}]
  %s6 = inlined_call_operand.vmem [shape: f32[1,128], index: 6, kind: input, shape index: {}]
  %s7 = inlined_call_operand.vmem [shape: bf16[128,2], index: 7, kind: input, shape index: {}]
  %s8 = inlined_call_operand.vmem [shape: f32[1,2], index: 8, kind: input, shape index: {}]
  %s9 = inlined_call_operand.vmem [shape: f32[8,2], index: 9, kind: output, shape index: {}]
  %s10 = sld [smem:[#allocation0]]
  $region46: #{policy_forward.1} parent=0
    _
  %s12 = ssub.s32 1, %s10
  %s13 = scalar_select 0, %s12, %s10
  // Predicated region
  $region2: #{policy_forward.1} parent=0 // pred_check
    _
  $region3: #{policy_forward.1} parent=0 // pred_check_branch
    %15 = sbr.rel (0) target = $region5
  $region4: #{policy_forward.1} parent=0 // pred_region
    _
  $region5: #{policy_forward.1} parent=0 // pred_fallthru
    _
  // Predicated region
  $region6: #{policy_forward.1} parent=0 // pred_check
    _
  $region7: #{policy_forward.1} parent=0 // pred_check_branch
    %17 = sbr.rel (0) target = $region9
  $region8: #{policy_forward.1} parent=0 // pred_region
    _
  $region9: #{policy_forward.1} parent=0 // pred_fallthru
    _
  // Predicated region
  $region10: #{policy_forward.1} parent=0 // pred_check
    _
  $region11: #{policy_forward.1} parent=0 // pred_check_branch
    %19 = sbr.rel (0) target = $region13
  $region12: #{policy_forward.1} parent=0 // pred_region
    _
  $region13: #{policy_forward.1} parent=0 // pred_fallthru
    _
  // Predicated region
  $region14: #{policy_forward.1} parent=0 // pred_check
    _
  $region15: #{policy_forward.1} parent=0 // pred_check_branch
    %21 = sbr.rel (0) target = $region17
  $region16: #{policy_forward.1} parent=0 // pred_region
    _
  $region17: #{policy_forward.1} parent=0 // pred_fallthru
    _
  // Predicated region
  $region18: #{policy_forward.1} parent=0 // pred_check
    _
  $region19: #{policy_forward.1} parent=0 // pred_check_branch
    %23 = sbr.rel (0) target = $region21
  $region20: #{policy_forward.1} parent=0 // pred_region
    _
  $region21: #{policy_forward.1} parent=0 // pred_fallthru
    _
  // Predicated region
  $region22: #{policy_forward.1} parent=0 // pred_check
    _
  $region23: #{policy_forward.1} parent=0 // pred_check_branch
    %25 = sbr.rel (0) target = $region25
  $region24: #{policy_forward.1} parent=0 // pred_region
    _
  $region25: #{policy_forward.1} parent=0 // pred_fallthru
    _
  // Predicated region
  $region26: #{policy_forward.1} parent=0 // pred_check
    _
  $region27: #{policy_forward.1} parent=0 // pred_check_branch
    %27 = sbr.rel (0) target = $region29
  $region28: #{policy_forward.1} parent=0 // pred_region
    _
  $region29: #{policy_forward.1} parent=0 // pred_fallthru
    _
  // Predicated region
  $region30: #{policy_forward.1} parent=0 // pred_check
    _
  $region31: #{policy_forward.1} parent=0 // pred_check_branch
    %29 = sbr.rel (0) target = $region33
  $region32: #{policy_forward.1} parent=0 // pred_region
    _
  $region33: #{policy_forward.1} parent=0 // pred_fallthru
    _
  // Predicated region
  $region34: #{policy_forward.1} parent=0 // pred_check
    _
  $region35: #{policy_forward.1} parent=0 // pred_check_branch
    %31 = sbr.rel (0) target = $region37
  $region36: #{policy_forward.1} parent=0 // pred_region
    _
  $region37: #{policy_forward.1} parent=0 // pred_fallthru
    _
  %v33 = vld [vmem:[%s0] sm:$0xff]
  %v34 = vld [vmem:[%s1] sm:$0x77]
  %36 = vset.pattern.permute.xlu0 0
  %37 = vperm.xlu0 %36, %v33
  %v38 = vpop.permute.xlu0 %37
  %v41 = vlaneseq
  %v42 = vshrl.u32 %v41, 7
  %v43 = vsub.s32 0, %v42
  %v44 = vrot.slane %v34, %v43
  %v45 = vlaneseq
  %v46 = vshrl.u32 %v45, 7
  %v47 = vsub.s32 4, %v46
  %v48 = vrot.slane %v34, %v47
  %v51 = vlaneseq
  %v52 = vshrl.u32 %v51, 7
  %v53 = vsub.s32 0, %v52
  %v54 = vrot.slane %v44, %v53
  %v55 = vlaneseq
  %v56 = vshrl.u32 %v55, 7
  %v57 = vsub.s32 0, %v56
  %v58 = vrot.slane %v48, %v57
  %v59 = vmul.f32 %v38, %v54
  %v60 = vmul.f32 %v38, %v58
  %61 = vset.pattern.permute.xlu0 1
  %62 = vperm.xlu0 %61, %v33
  %v63 = vpop.permute.xlu0 %62
  %v65 = vlaneseq
  %v66 = vshrl.u32 %v65, 7
  %v67 = vsub.s32 1, %v66
  %v68 = vrot.slane %v34, %v67
  %v69 = vlaneseq
  %v70 = vshrl.u32 %v69, 7
  %v71 = vsub.s32 5, %v70
  %v72 = vrot.slane %v34, %v71
  %v75 = vlaneseq
  %v76 = vshrl.u32 %v75, 7
  %v77 = vsub.s32 1, %v76
  %v78 = vrot.slane %v68, %v77
  %v79 = vlaneseq
  %v80 = vshrl.u32 %v79, 7
  %v81 = vsub.s32 1, %v80
  %v82 = vrot.slane %v72, %v81
  %v83 = vmul.f32 %v63, %v78
  %v84 = vmul.f32 %v63, %v82
  %v85 = vadd.f32 %v59, %v83
  %v86 = vadd.f32 %v60, %v84
  %87 = vset.pattern.permute.xlu0 2
  %88 = vperm.xlu0 %87, %v33
  %v89 = vpop.permute.xlu0 %88
  %v91 = vlaneseq
  %v92 = vshrl.u32 %v91, 7
  %v93 = vsub.s32 2, %v92
  %v94 = vrot.slane %v34, %v93
  %v95 = vlaneseq
  %v96 = vshrl.u32 %v95, 7
  %v97 = vsub.s32 6, %v96
  %v98 = vrot.slane %v34, %v97
  %v101 = vlaneseq
  %v102 = vshrl.u32 %v101, 7
  %v103 = vsub.s32 2, %v102
  %v104 = vrot.slane %v94, %v103
  %v105 = vlaneseq
  %v106 = vshrl.u32 %v105, 7
  %v107 = vsub.s32 2, %v106
  %v108 = vrot.slane %v98, %v107
  %v109 = vmul.f32 %v89, %v104
  %v110 = vmul.f32 %v89, %v108
  %v111 = vadd.f32 %v85, %v109
  %v112 = vadd.f32 %v86, %v110
  %v113 = vld [vmem:[%s2] sm:$0x3]
  %v115 = vlaneseq
  %v116 = vshrl.u32 %v115, 7
  %v117 = vsub.s32 0, %v116
  %v118 = vrot.slane %v113, %v117
  %v119 = vlaneseq
  %v120 = vshrl.u32 %v119, 7
  %v121 = vsub.s32 1, %v120
  %v122 = vrot.slane %v113, %v121
  %v125 = vadd.f32 %v111, %v118
  %v126 = vadd.f32 %v112, %v122
  %v127 = vmax.f32 %v125, 0.0
  %v128 = vmax.f32 %v126, 0.0
  %v129 = vpack.c.bf16 %v127, %v127
  %v130 = vpack.c.bf16 %v128, %v128
  %v131 = vld [vmem:[%s3] sm:$0xff]
  %v132 = vld [vmem:[%s3 + $0x8] sm:$0xff]
  %v133 = vld [vmem:[%s3 + $0x10] sm:$0xff]
  %v134 = vld [vmem:[%s3 + $0x18] sm:$0xff]
  %v135 = vld [vmem:[%s3 + $0x20] sm:$0xff]
  %v136 = vld [vmem:[%s3 + $0x28] sm:$0xff]
  %v137 = vld [vmem:[%s3 + $0x30] sm:$0xff]
  %v138 = vld [vmem:[%s3 + $0x38] sm:$0xff]
  %v139 = vld [vmem:[%s3 + $0x40] sm:$0xff]
  %v140 = vld [vmem:[%s3 + $0x48] sm:$0xff]
  %v141 = vld [vmem:[%s3 + $0x50] sm:$0xff]
  %v142 = vld [vmem:[%s3 + $0x58] sm:$0xff]
  %v143 = vld [vmem:[%s3 + $0x60] sm:$0xff]
  %v144 = vld [vmem:[%s3 + $0x68] sm:$0xff]
  %v145 = vld [vmem:[%s3 + $0x70] sm:$0xff]
  %v146 = vld [vmem:[%s3 + $0x78] sm:$0xff]
  %v147 = vld [vmem:[%s3 + $0x80] sm:$0xff]
  %v148 = vld [vmem:[%s3 + $0x88] sm:$0xff]
  %v149 = vld [vmem:[%s3 + $0x90] sm:$0xff]
  %v150 = vld [vmem:[%s3 + $0x98] sm:$0xff]
  %v151 = vld [vmem:[%s3 + $0xa0] sm:$0xff]
  %v152 = vld [vmem:[%s3 + $0xa8] sm:$0xff]
  %v153 = vld [vmem:[%s3 + $0xb0] sm:$0xff]
  %v154 = vld [vmem:[%s3 + $0xb8] sm:$0xff]
  %v155 = vld [vmem:[%s3 + $0xc0] sm:$0xff]
  %v156 = vld [vmem:[%s3 + $0xc8] sm:$0xff]
  %v157 = vld [vmem:[%s3 + $0xd0] sm:$0xff]
  %v158 = vld [vmem:[%s3 + $0xd8] sm:$0xff]
  %v159 = vld [vmem:[%s3 + $0xe0] sm:$0xff]
  %v160 = vld [vmem:[%s3 + $0xe8] sm:$0xff]
  %v161 = vld [vmem:[%s3 + $0xf0] sm:$0xff]
  %v162 = vld [vmem:[%s3 + $0xf8] sm:$0xff]
  %v163 = vld [vmem:[%s4] sm:$0x3]
  %v165 = vlaneseq
  %v166 = vshrl.u32 %v165, 7
  %v167 = vsub.s32 0, %v166
  %v168 = vrot.slane %v163, %v167
  %v169 = vlaneseq
  %v170 = vshrl.u32 %v169, 7
  %v171 = vsub.s32 1, %v170
  %v172 = vrot.slane %v163, %v171
  %v207 = vunpack.c.l.b16 %v131
  %v208 = vunpack.c.h.b16 %v131
  %v209 = vunpack.c.l.b16 %v132
  %v210 = vunpack.c.h.b16 %v132
  %v211 = vunpack.c.l.b16 %v133
  %v212 = vunpack.c.h.b16 %v133
  %v213 = vunpack.c.l.b16 %v134
  %v214 = vunpack.c.h.b16 %v134
  %v215 = vunpack.c.l.b16 %v135
  %v216 = vunpack.c.h.b16 %v135
  %v217 = vunpack.c.l.b16 %v136
  %v218 = vunpack.c.h.b16 %v136
  %v219 = vunpack.c.l.b16 %v137
  %v220 = vunpack.c.h.b16 %v137
  %v221 = vunpack.c.l.b16 %v138
  %v222 = vunpack.c.h.b16 %v138
  %v223 = vunpack.c.l.b16 %v139
  %v224 = vunpack.c.h.b16 %v139
  %v225 = vunpack.c.l.b16 %v140
  %v226 = vunpack.c.h.b16 %v140
  %v227 = vunpack.c.l.b16 %v141
  %v228 = vunpack.c.h.b16 %v141
  %v229 = vunpack.c.l.b16 %v142
  %v230 = vunpack.c.h.b16 %v142
  %v231 = vunpack.c.l.b16 %v143
  %v232 = vunpack.c.h.b16 %v143
  %v233 = vunpack.c.l.b16 %v144
  %v234 = vunpack.c.h.b16 %v144
  %v235 = vunpack.c.l.b16 %v145
  %v236 = vunpack.c.h.b16 %v145
  %v237 = vunpack.c.l.b16 %v146
  %v238 = vunpack.c.h.b16 %v146
  %v239 = vunpack.c.l.b16 %v147
  %v240 = vunpack.c.h.b16 %v147
  %v241 = vunpack.c.l.b16 %v148
  %v242 = vunpack.c.h.b16 %v148
  %v243 = vunpack.c.l.b16 %v149
  %v244 = vunpack.c.h.b16 %v149
  %v245 = vunpack.c.l.b16 %v150
  %v246 = vunpack.c.h.b16 %v150
  %v247 = vunpack.c.l.b16 %v151
  %v248 = vunpack.c.h.b16 %v151
  %v249 = vunpack.c.l.b16 %v152
  %v250 = vunpack.c.h.b16 %v152
  %v251 = vunpack.c.l.b16 %v153
  %v252 = vunpack.c.h.b16 %v153
  %v253 = vunpack.c.l.b16 %v154
  %v254 = vunpack.c.h.b16 %v154
  %v255 = vunpack.c.l.b16 %v155
  %v256 = vunpack.c.h.b16 %v155
  %v257 = vunpack.c.l.b16 %v156
  %v258 = vunpack.c.h.b16 %v156
  %v259 = vunpack.c.l.b16 %v157
  %v260 = vunpack.c.h.b16 %v157
  %v261 = vunpack.c.l.b16 %v158
  %v262 = vunpack.c.h.b16 %v158
  %v263 = vunpack.c.l.b16 %v159
  %v264 = vunpack.c.h.b16 %v159
  %v265 = vunpack.c.l.b16 %v160
  %v266 = vunpack.c.h.b16 %v160
  %v267 = vunpack.c.l.b16 %v161
  %v268 = vunpack.c.h.b16 %v161
  %v269 = vunpack.c.l.b16 %v162
  %v270 = vunpack.c.h.b16 %v162
  %v271 = vpack.c.b16 %v209, %v207
  %v272 = vpack.c.b16 %v210, %v208
  %v273 = vpack.c.b16 %v213, %v211
  %v274 = vpack.c.b16 %v214, %v212
  %v275 = vpack.c.b16 %v217, %v215
  %v276 = vpack.c.b16 %v218, %v216
  %v277 = vpack.c.b16 %v221, %v219
  %v278 = vpack.c.b16 %v222, %v220
  %v279 = vpack.c.b16 %v225, %v223
  %v280 = vpack.c.b16 %v226, %v224
  %v281 = vpack.c.b16 %v229, %v227
  %v282 = vpack.c.b16 %v230, %v228
  %v283 = vpack.c.b16 %v233, %v231
  %v284 = vpack.c.b16 %v234, %v232
  %v285 = vpack.c.b16 %v237, %v235
  %v286 = vpack.c.b16 %v238, %v236
  %v287 = vpack.c.b16 %v241, %v239
  %v288 = vpack.c.b16 %v242, %v240
  %v289 = vpack.c.b16 %v245, %v243
  %v290 = vpack.c.b16 %v246, %v244
  %v291 = vpack.c.b16 %v249, %v247
  %v292 = vpack.c.b16 %v250, %v248
  %v293 = vpack.c.b16 %v253, %v251
  %v294 = vpack.c.b16 %v254, %v252
  %v295 = vpack.c.b16 %v257, %v255
  %v296 = vpack.c.b16 %v258, %v256
  %v297 = vpack.c.b16 %v261, %v259
  %v298 = vpack.c.b16 %v262, %v260
  %v299 = vpack.c.b16 %v265, %v263
  %v300 = vpack.c.b16 %v266, %v264
  %v301 = vpack.c.b16 %v269, %v267
  %v302 = vpack.c.b16 %v270, %v268
  %335 = vmatprep.subr.bf16.mxu0 %v272
  %336 = vmatpush1.bf16.msra.mxu0 %v271
  %337 = vmatprep.subr.bf16.mxu0 %v274
  %338 = vmatpush1.bf16.msra.mxu0 %v273
  %339 = vmatprep.subr.bf16.mxu0 %v276
  %340 = vmatpush1.bf16.msra.mxu0 %v275
  %341 = vmatprep.subr.bf16.mxu0 %v278
  %342 = vmatpush1.bf16.msra.mxu0 %v277
  %343 = vmatprep.subr.bf16.mxu0 %v280
  %344 = vmatpush1.bf16.msra.mxu0 %v279
  %345 = vmatprep.subr.bf16.mxu0 %v282
  %346 = vmatpush1.bf16.msra.mxu0 %v281
  %347 = vmatprep.subr.bf16.mxu0 %v284
  %348 = vmatpush1.bf16.msra.mxu0 %v283
  %349 = vmatprep.subr.bf16.mxu0 %v286
  %350 = vmatpush1.bf16.msra.mxu0 %v285
  %351 = vmatprep.subr.bf16.mxu0 %v288
  %352 = vmatpush1.bf16.msra.mxu0 %v287
  %353 = vmatprep.subr.bf16.mxu0 %v290
  %354 = vmatpush1.bf16.msra.mxu0 %v289
  %355 = vmatprep.subr.bf16.mxu0 %v292
  %356 = vmatpush1.bf16.msra.mxu0 %v291
  %357 = vmatprep.subr.bf16.mxu0 %v294
  %358 = vmatpush1.bf16.msra.mxu0 %v293
  %359 = vmatprep.subr.bf16.mxu0 %v296
  %360 = vmatpush1.bf16.msra.mxu0 %v295
  %361 = vmatprep.subr.bf16.mxu0 %v298
  %362 = vmatpush1.bf16.msra.mxu0 %v297
  %363 = vmatprep.subr.bf16.mxu0 %v300
  %364 = vmatpush1.bf16.msra.mxu0 %v299
  %365 = vmatprep.subr.bf16.mxu0 %v302
  %366 = vmatpush1.bf16.msra.mxu0 %v301
  %367 = vmatprep.mubr.bf16.mxu0 %v130
  %368 = vmatmul.mubr.bf16.gmra.mrb[0].mxu0 %v129
  %v369 = vpop.f32.mrb[0].mxu0
  %v370 = vadd.f32 %v168, %v369
  %v371 = vpop.f32.mrb[0].mxu0
  %v372 = vadd.f32 %v172, %v371
  %v373 = vpop.f32.mrb[0].mxu0
  %v374 = vpop.f32.mrb[0].mxu0
  %375 = vdwg.mxu0
  %v376 = vmax.f32 %v370, 0.0
  %v377 = vmax.f32 %v372, 0.0
  %v378 = vpack.c.bf16 %v376, %v376
  %v379 = vpack.c.bf16 %v377, %v377
  %v380 = vld [vmem:[%s5] sm:$0xf]
  %v381 = vld [vmem:[%s5 + $0x4] sm:$0xf]
  %v382 = vld [vmem:[%s5 + $0x8] sm:$0xf]
  %v383 = vld [vmem:[%s5 + $0xc] sm:$0xf]
  %v384 = vld [vmem:[%s5 + $0x10] sm:$0xf]
  %v385 = vld [vmem:[%s5 + $0x14] sm:$0xf]
  %v386 = vld [vmem:[%s5 + $0x18] sm:$0xf]
  %v387 = vld [vmem:[%s5 + $0x1c] sm:$0xf]
  %v388 = vld [vmem:[%s5 + $0x20] sm:$0xf]
  %v389 = vld [vmem:[%s5 + $0x24] sm:$0xf]
  %v390 = vld [vmem:[%s5 + $0x28] sm:$0xf]
  %v391 = vld [vmem:[%s5 + $0x2c] sm:$0xf]
  %v392 = vld [vmem:[%s5 + $0x30] sm:$0xf]
  %v393 = vld [vmem:[%s5 + $0x34] sm:$0xf]
  %v394 = vld [vmem:[%s5 + $0x38] sm:$0xf]
  %v395 = vld [vmem:[%s5 + $0x3c] sm:$0xf]
  %v396 = vld [vmem:[%s5 + $0x40] sm:$0xf]
  %v397 = vld [vmem:[%s5 + $0x44] sm:$0xf]
  %v398 = vld [vmem:[%s5 + $0x48] sm:$0xf]
  %v399 = vld [vmem:[%s5 + $0x4c] sm:$0xf]
  %v400 = vld [vmem:[%s5 + $0x50] sm:$0xf]
  %v401 = vld [vmem:[%s5 + $0x54] sm:$0xf]
  %v402 = vld [vmem:[%s5 + $0x58] sm:$0xf]
  %v403 = vld [vmem:[%s5 + $0x5c] sm:$0xf]
  %v404 = vld [vmem:[%s5 + $0x60] sm:$0xf]
  %v405 = vld [vmem:[%s5 + $0x64] sm:$0xf]
  %v406 = vld [vmem:[%s5 + $0x68] sm:$0xf]
  %v407 = vld [vmem:[%s5 + $0x6c] sm:$0xf]
  %v408 = vld [vmem:[%s5 + $0x70] sm:$0xf]
  %v409 = vld [vmem:[%s5 + $0x74] sm:$0xf]
  %v410 = vld [vmem:[%s5 + $0x78] sm:$0xf]
  %v411 = vld [vmem:[%s5 + $0x7c] sm:$0xf]
  %v412 = vld [vmem:[%s6] sm:$0x1]
  %v414 = vlaneseq
  %v415 = vshrl.u32 %v414, 7
  %v416 = vsub.s32 0, %v415
  %v417 = vrot.slane %v412, %v416
  %v451 = vunpack.c.l.b16 %v380
  %v452 = vunpack.c.l.b16 %v381
  %v453 = vunpack.c.l.b16 %v382
  %v454 = vunpack.c.l.b16 %v383
  %v455 = vunpack.c.l.b16 %v384
  %v456 = vunpack.c.l.b16 %v385
  %v457 = vunpack.c.l.b16 %v386
  %v458 = vunpack.c.l.b16 %v387
  %v459 = vunpack.c.l.b16 %v388
  %v460 = vunpack.c.l.b16 %v389
  %v461 = vunpack.c.l.b16 %v390
  %v462 = vunpack.c.l.b16 %v391
  %v463 = vunpack.c.l.b16 %v392
  %v464 = vunpack.c.l.b16 %v393
  %v465 = vunpack.c.l.b16 %v394
  %v466 = vunpack.c.l.b16 %v395
  %v467 = vunpack.c.l.b16 %v396
  %v468 = vunpack.c.l.b16 %v397
  %v469 = vunpack.c.l.b16 %v398
  %v470 = vunpack.c.l.b16 %v399
  %v471 = vunpack.c.l.b16 %v400
  %v472 = vunpack.c.l.b16 %v401
  %v473 = vunpack.c.l.b16 %v402
  %v474 = vunpack.c.l.b16 %v403
  %v475 = vunpack.c.l.b16 %v404
  %v476 = vunpack.c.l.b16 %v405
  %v477 = vunpack.c.l.b16 %v406
  %v478 = vunpack.c.l.b16 %v407
  %v479 = vunpack.c.l.b16 %v408
  %v480 = vunpack.c.l.b16 %v409
  %v481 = vunpack.c.l.b16 %v410
  %v482 = vunpack.c.l.b16 %v411
  %v483 = vpack.c.b16 %v452, %v451
  %v484 = vpack.c.b16 %v454, %v453
  %v485 = vpack.c.b16 %v456, %v455
  %v486 = vpack.c.b16 %v458, %v457
  %v487 = vpack.c.b16 %v460, %v459
  %v488 = vpack.c.b16 %v462, %v461
  %v489 = vpack.c.b16 %v464, %v463
  %v490 = vpack.c.b16 %v466, %v465
  %v491 = vpack.c.b16 %v468, %v467
  %v492 = vpack.c.b16 %v470, %v469
  %v493 = vpack.c.b16 %v472, %v471
  %v494 = vpack.c.b16 %v474, %v473
  %v495 = vpack.c.b16 %v476, %v475
  %v496 = vpack.c.b16 %v478, %v477
  %v497 = vpack.c.b16 %v480, %v479
  %v498 = vpack.c.b16 %v482, %v481
  %515 = vmatprep.subr.bf16.mxu0 0
  %516 = vmatpush1.bf16.msra.mxu0 %v483
  %517 = vmatprep.subr.bf16.mxu0 0
  %518 = vmatpush1.bf16.msra.mxu0 %v484
  %519 = vmatprep.subr.bf16.mxu0 0
  %520 = vmatpush1.bf16.msra.mxu0 %v485
  %521 = vmatprep.subr.bf16.mxu0 0
  %522 = vmatpush1.bf16.msra.mxu0 %v486
  %523 = vmatprep.subr.bf16.mxu0 0
  %524 = vmatpush1.bf16.msra.mxu0 %v487
  %525 = vmatprep.subr.bf16.mxu0 0
  %526 = vmatpush1.bf16.msra.mxu0 %v488
  %527 = vmatprep.subr.bf16.mxu0 0
  %528 = vmatpush1.bf16.msra.mxu0 %v489
  %529 = vmatprep.subr.bf16.mxu0 0
  %530 = vmatpush1.bf16.msra.mxu0 %v490
  %531 = vmatprep.subr.bf16.mxu0 0
  %532 = vmatpush1.bf16.msra.mxu0 %v491
  %533 = vmatprep.subr.bf16.mxu0 0
  %534 = vmatpush1.bf16.msra.mxu0 %v492
  %535 = vmatprep.subr.bf16.mxu0 0
  %536 = vmatpush1.bf16.msra.mxu0 %v493
  %537 = vmatprep.subr.bf16.mxu0 0
  %538 = vmatpush1.bf16.msra.mxu0 %v494
  %539 = vmatprep.subr.bf16.mxu0 0
  %540 = vmatpush1.bf16.msra.mxu0 %v495
  %541 = vmatprep.subr.bf16.mxu0 0
  %542 = vmatpush1.bf16.msra.mxu0 %v496
  %543 = vmatprep.subr.bf16.mxu0 0
  %544 = vmatpush1.bf16.msra.mxu0 %v497
  %545 = vmatprep.subr.bf16.mxu0 0
  %546 = vmatpush1.bf16.msra.mxu0 %v498
  %547 = vmatprep.mubr.bf16.mxu0 %v379
  %548 = vmatmul.mubr.bf16.gmra.mrb[0].mxu0 %v378
  %v549 = vpop.f32.mrb[0].mxu0
  %v550 = vadd.f32 %v417, %v549
  %v551 = vpop.f32.mrb[0].mxu0
  %v552 = vpop.f32.mrb[0].mxu0
  %v553 = vpop.f32.mrb[0].mxu0
  %554 = vdwg.mxu0
  %v555 = vmax.f32 %v550, 0.0
  %v556 = vpack.c.bf16 %v555, %v555
  %v557 = vld [vmem:[%s7] sm:$0xf]
  %v558 = vld [vmem:[%s7 + $0x4] sm:$0xf]
  %v559 = vld [vmem:[%s7 + $0x8] sm:$0xf]
  %v560 = vld [vmem:[%s7 + $0xc] sm:$0xf]
  %v561 = vld [vmem:[%s7 + $0x10] sm:$0xf]
  %v562 = vld [vmem:[%s7 + $0x14] sm:$0xf]
  %v563 = vld [vmem:[%s7 + $0x18] sm:$0xf]
  %v564 = vld [vmem:[%s7 + $0x1c] sm:$0xf]
  %v565 = vld [vmem:[%s7 + $0x20] sm:$0xf]
  %v566 = vld [vmem:[%s7 + $0x24] sm:$0xf]
  %v567 = vld [vmem:[%s7 + $0x28] sm:$0xf]
  %v568 = vld [vmem:[%s7 + $0x2c] sm:$0xf]
  %v569 = vld [vmem:[%s7 + $0x30] sm:$0xf]
  %v570 = vld [vmem:[%s7 + $0x34] sm:$0xf]
  %v571 = vld [vmem:[%s7 + $0x38] sm:$0xf]
  %v572 = vld [vmem:[%s7 + $0x3c] sm:$0xf]
  %v573 = vld [vmem:[%s8] sm:$0x1]
  %v575 = vlaneseq
  %v576 = vshrl.u32 %v575, 7
  %v577 = vsub.s32 0, %v576
  %v578 = vrot.slane %v573, %v577
  %v596 = vunpack.c.l.b16 %v557
  %v597 = vunpack.c.l.b16 %v558
  %v598 = vunpack.c.l.b16 %v559
  %v599 = vunpack.c.l.b16 %v560
  %v600 = vunpack.c.l.b16 %v561
  %v601 = vunpack.c.l.b16 %v562
  %v602 = vunpack.c.l.b16 %v563
  %v603 = vunpack.c.l.b16 %v564
  %v604 = vunpack.c.l.b16 %v565
  %v605 = vunpack.c.l.b16 %v566
  %v606 = vunpack.c.l.b16 %v567
  %v607 = vunpack.c.l.b16 %v568
  %v608 = vunpack.c.l.b16 %v569
  %v609 = vunpack.c.l.b16 %v570
  %v610 = vunpack.c.l.b16 %v571
  %v611 = vunpack.c.l.b16 %v572
  %v612 = vpack.c.b16 %v597, %v596
  %v613 = vpack.c.b16 %v599, %v598
  %v614 = vpack.c.b16 %v601, %v600
  %v615 = vpack.c.b16 %v603, %v602
  %v616 = vpack.c.b16 %v605, %v604
  %v617 = vpack.c.b16 %v607, %v606
  %v618 = vpack.c.b16 %v609, %v608
  %v619 = vpack.c.b16 %v611, %v610
  %628 = vmatprep.subr.bf16.mxu0 0
  %629 = vmatpush1.bf16.msra.mxu0 %v612
  %630 = vmatprep.subr.bf16.mxu0 0
  %631 = vmatpush1.bf16.msra.mxu0 %v613
  %632 = vmatprep.subr.bf16.mxu0 0
  %633 = vmatpush1.bf16.msra.mxu0 %v614
  %634 = vmatprep.subr.bf16.mxu0 0
  %635 = vmatpush1.bf16.msra.mxu0 %v615
  %636 = vmatprep.subr.bf16.mxu0 0
  %637 = vmatpush1.bf16.msra.mxu0 %v616
  %638 = vmatprep.subr.bf16.mxu0 0
  %639 = vmatpush1.bf16.msra.mxu0 %v617
  %640 = vmatprep.subr.bf16.mxu0 0
  %641 = vmatpush1.bf16.msra.mxu0 %v618
  %642 = vmatprep.subr.bf16.mxu0 0
  %643 = vmatpush1.bf16.msra.mxu0 %v619
  %644 = vmatprep.subr.bf16.mxu0 0
  %645 = vmatpush1.bf16.msra.mxu0 0
  %646 = vmatprep.subr.bf16.mxu0 0
  %647 = vmatpush1.bf16.msra.mxu0 0
  %648 = vmatprep.subr.bf16.mxu0 0
  %649 = vmatpush1.bf16.msra.mxu0 0
  %650 = vmatprep.subr.bf16.mxu0 0
  %651 = vmatpush1.bf16.msra.mxu0 0
  %652 = vmatprep.subr.bf16.mxu0 0
  %653 = vmatpush1.bf16.msra.mxu0 0
  %654 = vmatprep.subr.bf16.mxu0 0
  %655 = vmatpush1.bf16.msra.mxu0 0
  %656 = vmatprep.subr.bf16.mxu0 0
  %657 = vmatpush1.bf16.msra.mxu0 0
  %658 = vmatprep.subr.bf16.mxu0 0
  %659 = vmatpush1.bf16.msra.mxu0 0
  %660 = vmatprep.mubr.bf16.mxu0 0
  %661 = vmatmul.mubr.bf16.gmra.mrb[0].mxu0 %v556
  %v662 = vpop.f32.mrb[0].mxu0
  %v663 = vadd.f32 %v578, %v662
  %v664 = vpop.f32.mrb[0].mxu0
  %v665 = vpop.f32.mrb[0].mxu0
  %v666 = vpop.f32.mrb[0].mxu0
  %667 = vdwg.mxu0
  %v668 = vlaneseq
  %v669 = vand.u32 %v668, 127
  %vm670 = vcmp.eq.s32.totalorder %v669, 0
  %v671 = vtanh.pop %v663
  %v672 = vmul.f32 %v671, 2.0
  %v673 = vmax.f32 %v663, 0.0
  %vm674 = vcmp.ne.f32.partialorder %v663, %v663
  %v675 = vadd.f32 %v663, 0.0
  %v676 = vand.u32 2147483647, %v663
  %v677 = vsub.f32 0.0, %v676
  %v678 = vmul.f32 %v677, 1.442695
  %v679 = vpow.pop %v678
  %v680 = vadd.f32 %v679, 1.0
  %v681 = vlog2.pop %v680
  %v682 = vmul.f32 %v681, 0.6931472
  %v683 = vmul.f32 -0.5, %v679
  %v684 = vadd.f32 %v683, 1.0
  %v685 = vmul.f32 %v684, %v679
  %v686 = vand.u32 2147483647, %v679
  %vm687 = vcmp.lt.f32.partialorder %v686, 0.0004427343
  %v688 = vsel %vm687, %v685, %v682
  %v689 = vadd.f32 %v673, %v688
  %v690 = vsel %vm674, %v675, %v689
  %v691 = vsel %vm670, %v672, %v690
  %vm692 = vcmask 15360
  %693 = vst.msk [vmem:[%s9] sm:$0xff] %vm692, %v691
  // Predicated region
  $region38: #{policy_forward.1} parent=0 // pred_check
    _
  $region39: #{policy_forward.1} parent=0 // pred_check_branch
    %695 = sbr.rel (0) target = $region41
  $region40: #{policy_forward.1} parent=0 // pred_region
    _
  $region41: #{policy_forward.1} parent=0 // pred_fallthru
    _
  // Predicated region
  $region42: #{policy_forward.1} parent=0 // pred_check
    _
  $region43: #{policy_forward.1} parent=0 // pred_check_branch
    %697 = sbr.rel (0) target = $region45
  $region44: #{policy_forward.1} parent=0 // pred_region
    _
  $region45: #{policy_forward.1} parent=0 // pred_fallthru
    _

</llo_original>
